<compile_context>
chip_gen: v6e
topology: v6e:2x2x1
jax: 0.10.0
libtpu: 0.0.40
codegen_flags: <defaults>
</compile_context>

<pallas_src>
import jax
import jax.numpy as jnp
from jax.experimental import pallas as pl
from jax.experimental.pallas import tpu as pltpu


def _round_up(x, m):
    return ((x + m - 1) // m) * m


def _generator_kernel(z_ref, w_ref, b_ref, o_ref):
    # One lane-dense N-tile per grid step: (Bp, Z) @ (Z, TN) on the MXU with
    # f32 accumulation; bias add (VPU) + tanh (EUP) stay in f32.
    acc = jnp.dot(z_ref[...], w_ref[...], preferred_element_type=jnp.float32)
    o_ref[...] = jnp.tanh(acc + b_ref[...]).astype(o_ref.dtype)


def _pick_tile_n(n_pad, z_dim, b_pad, w_bytes, budget_bytes):
    """Largest lane-dense TN whose double-buffered working set fits the budget."""

    def working_set(tn):
        return (2 * z_dim * tn * w_bytes      # double-buffered weight tiles
                + 2 * tn * 4                  # double-buffered bias tiles (f32)
                + 2 * b_pad * tn * 4          # double-buffered output tiles (f32)
                + b_pad * z_dim * w_bytes)    # resident activation block

    for cand in (16384, 8192, 4096, 2048, 1024, 512, 256, 128):
        tn = min(cand, n_pad)
        if working_set(tn) <= budget_bytes:
            return tn, working_set(tn)
    return 128, working_set(128)


def generator_forward(z, weight, bias):
    """z:(B, Z) f32, weight:(Z, N) bf16/f32, bias:(1, N) f32 -> (B, N) f32."""
    B, Z = z.shape
    Zw, N = weight.shape
    assert Zw == Z
    w_dtype = weight.dtype
    w_bytes = jnp.dtype(w_dtype).itemsize

    # Pad batch to a sublane multiple (8): unmasked vst, full MXU result rows.
    Bp = max(8, _round_up(B, 8))

    # Tile N; budget ~24 MiB keeps double-buffered tiles comfortable even on
    # v7x (64 MiB physical / 32 MiB scoped VMEM per TensorCore).
    Np128 = _round_up(N, 128)
    TN, working = _pick_tile_n(Np128, Z, Bp, w_bytes, budget_bytes=24 * 1024 * 1024)
    Np = _round_up(N, TN)

    # Pad operands (zero padding is sliced off the output, so it is inert).
    z_p = jnp.zeros((Bp, Z), w_dtype).at[:B].set(z.astype(w_dtype))
    w_p = weight if Np == N else jnp.pad(weight, ((0, 0), (0, Np - N)))
    b_p = bias.astype(jnp.float32)
    if Np != N:
        b_p = jnp.pad(b_p, ((0, 0), (0, Np - N)))

    grid_n = Np // TN
    cost = pl.CostEstimate(
        flops=2 * Bp * Z * Np,
        transcendentals=Bp * Np,
        bytes_accessed=w_bytes * (Z * Np + Bp * Z) + 4 * Np + 4 * Bp * Np,
    )

    out = pl.pallas_call(
        _generator_kernel,
        out_shape=jax.ShapeDtypeStruct((Bp, Np), jnp.float32),
        grid_spec=pltpu.PrefetchScalarGridSpec(
            num_scalar_prefetch=0,
            grid=(grid_n,),
            in_specs=[
                pl.BlockSpec((Bp, Z), lambda j: (0, 0)),   # resident activations
                pl.BlockSpec((Z, TN), lambda j: (0, j)),   # streamed weight tile
                pl.BlockSpec((1, TN), lambda j: (0, j)),   # streamed bias tile
            ],
            out_specs=pl.BlockSpec((Bp, TN), lambda j: (0, j)),
        ),
        compiler_params=pltpu.CompilerParams(
            dimension_semantics=("parallel",),  # independent N tiles -> megacore
            vmem_limit_bytes=min(64 * 1024 * 1024,
                                 max(32 * 1024 * 1024, working + (8 << 20))),
        ),
        cost_estimate=cost,
    )(z_p, w_p, b_p)

    return out[:B, :N]


class WrapperPallas:
    """JAX/Pallas port of `Wrapper` for the (latent='z', vanilla GAN) config."""

    def __init__(self, z_dim, out_channels, out_hw, latent="z", is_style=False,
                 weight_dtype=jnp.bfloat16):
        assert latent == "z" and not is_style, (
            "Only the vanilla-GAN 'z' latent path is implemented."
        )
        self.z_dim = z_dim
        self.out_channels = out_channels
        self.out_hw = out_hw
        n_out = out_channels * out_hw * out_hw
        # Deterministic parameter init (synthetic — not a checkpoint load).
        kw, kb = jax.random.split(jax.random.PRNGKey(42))
        self.weight = (
            jax.random.normal(kw, (z_dim, n_out), dtype=jnp.float32)
            * (1.0 / jnp.sqrt(z_dim))
        ).astype(weight_dtype)                 # streamed in bf16: ~2x less HBM traffic
        self.bias = jax.random.normal(kb, (1, n_out), dtype=jnp.float32) * 0.01

    def __call__(self, param):
        # latent == 'z', not stylegan  ->  image = self.model(param)
        flat = generator_forward(param, self.weight, self.bias)
        B = param.shape[0]
        # NCHW output, matching the PyTorch generator convention.
        return flat.reshape(B, self.out_channels, self.out_hw, self.out_hw)


if __name__ == "__main__":
    B, Z, C, HW = 2, 32, 4, 16
    key = jax.random.PRNGKey(0)
    z = jax.random.normal(key, (B, Z), dtype=jnp.float32)

    wrapper = WrapperPallas(z_dim=Z, out_channels=C, out_hw=HW)
    image = wrapper(z)
    jax.block_until_ready(image)

    # Sanity check against plain-JAX reference using the same bf16 parameters.
    w_f32 = wrapper.weight.astype(jnp.float32)
    z_q = z.astype(jnp.bfloat16).astype(jnp.float32)
    ref = jnp.tanh(z_q @ w_f32 + wrapper.bias).reshape(B, C, HW, HW)
    assert image.shape == (B, C, HW, HW)
    assert jnp.allclose(image, ref, atol=2e-3, rtol=2e-3)

    print("KERNEL_OK")
</pallas_src>

<mosaic_0001>
module attributes {stable_mosaic.version = 11 : i64} {
  func.func @_generator_kernel(%arg0: i32, %arg1: memref<8x32xbf16, #tpu.memory_space<vmem>>, %arg2: memref<32x1024xbf16, #tpu.memory_space<vmem>>, %arg3: memref<1x1024xf32, #tpu.memory_space<vmem>>, %arg4: memref<8x1024xf32, #tpu.memory_space<vmem>>) attributes {dimension_semantics = [#tpu.dimension_semantics<parallel>], iteration_bounds = array<i64: 1>, scalar_prefetch = 0 : i64, scratch_operands = 0 : i64, tpu.core_type = #tpu.core_type<tc>, window_params = [{pipeline_mode = #tpu.pipeline_mode<synchronous>, transform_indices = @transform_0, window_bounds = array<i64: 8, 32>}, {transform_indices = @transform_1, window_bounds = array<i64: 32, 1024>}, {transform_indices = @transform_2, window_bounds = array<i64: 1, 1024>}, {transform_indices = @transform_3, window_bounds = array<i64: 8, 1024>}]} {
    %c0 = arith.constant 0 : index
    %c0_0 = arith.constant 0 : index
    %0 = vector.load %arg1[%c0, %c0_0] : memref<8x32xbf16, #tpu.memory_space<vmem>>, vector<8x32xbf16>
    %c0_1 = arith.constant 0 : index
    %c0_2 = arith.constant 0 : index
    %1 = vector.load %arg2[%c0_1, %c0_2] : memref<32x1024xbf16, #tpu.memory_space<vmem>>, vector<32x1024xbf16>
    %cst = arith.constant dense<0.000000e+00> : vector<8x1024xf32>
    %2 = tpu.matmul %0, %1, %cst {dimension_numbers = #tpu.dot_dimension_numbers<[1], [0], [0], [1], [0, 0, 1, 1], [], []>} : vector<8x32xbf16>, vector<32x1024xbf16>, vector<8x1024xf32> -> vector<8x1024xf32>
    %c0_3 = arith.constant 0 : index
    %c0_4 = arith.constant 0 : index
    %3 = vector.load %arg3[%c0_3, %c0_4] : memref<1x1024xf32, #tpu.memory_space<vmem>>, vector<1x1024xf32>
    %4 = vector.broadcast %3 : vector<1x1024xf32> to vector<8x1024xf32>
    %5 = arith.addf %2, %4 : vector<8x1024xf32>
    %6 = math.tanh %5 : vector<8x1024xf32>
    %c0_5 = arith.constant 0 : index
    %c0_6 = arith.constant 0 : index
    %7 = vector.load %arg4[%c0_5, %c0_6] : memref<8x1024xf32, #tpu.memory_space<vmem>>, vector<8x1024xf32>
    tpu.vector_store %arg4[%c0_5, %c0_6], %6 {strides = array<i32>} : memref<8x1024xf32, #tpu.memory_space<vmem>>, vector<8x1024xf32>,
    return
  }
  func.func @transform_0(%arg0: i32) -> (i32, i32) {
    %c0_i32 = arith.constant 0 : i32
    %c0_i32_0 = arith.constant 0 : i32
    %c0_i32_1 = arith.constant 0 : i32
    return %c0_i32, %c0_i32_0 : i32, i32
  }
  func.func @transform_1(%arg0: i32) -> (i32, i32) {
    %c0_i32 = arith.constant 0 : i32
    %c0_i32_0 = arith.constant 0 : i32
    return %c0_i32, %arg0 : i32, i32
  }
  func.func @transform_2(%arg0: i32) -> (i32, i32) {
    %c0_i32 = arith.constant 0 : i32
    %c0_i32_0 = arith.constant 0 : i32
    return %c0_i32, %arg0 : i32, i32
  }
  func.func @transform_3(%arg0: i32) -> (i32, i32) {
    %c0_i32 = arith.constant 0 : i32
    %c0_i32_0 = arith.constant 0 : i32
    return %c0_i32, %arg0 : i32, i32
  }
}

</mosaic_0001>

<llo_original>
// kernel: tpu_custom_call.1
$region0: #{tpu_custom_call.1}
  #allocation0 [shape = 'u32[]', space=smem, size = 0x4, offset = 0x4, fixed_abs, tag = 'smem constant byte address 0x4 - core index']
  #allocation1 [shape = 'u32[144,128]{1,0:T(1,128)}', space=vmem, size = 0x12000, scoped, tag = 'internal scratch']
  %s0 = inlined_call_operand.hbm [shape: bf16[8,32], index: 0, kind: input, shape index: {}]
  %s1 = inlined_call_operand.hbm [shape: bf16[32,1024], index: 1, kind: input, shape index: {}]
  %s2 = inlined_call_operand.hbm [shape: f32[1,1024], index: 2, kind: input, shape index: {}]
  %s3 = inlined_call_operand.hbm [shape: f32[8,1024], index: 3, kind: output, shape index: {}]
  %s4 = sld [smem:[#allocation0]]
  $region34: #{tpu_custom_call.1} parent=0
    _
  %s6 = ssub.s32 1, %s4
  %s7 = scalar_select 0, %s6, %s4
  $region1: #{tpu_custom_call.1} parent=0
    #allocation2 [shape = 'u8[2048]{0}', space=vmem, size = 0x800, scoped, tag = 'input window, operand 0, single buffered']
    #allocation3 [shape = 's32[1]{0}', space=sflag, size = 0x4, scoped, tag = 'scoped memory for tpu_custom_call.1']
    #allocation4 [shape = 's32[1]{0}', space=sflag, size = 0x4, scoped, tag = 'scoped memory for tpu_custom_call.1']
    #allocation5 [shape = 'u8[65536]{0}', space=vmem, size = 0x10000, scoped, tag = 'input window, operand 1, single buffered']
    #allocation6 [shape = 's32[1]{0}', space=sflag, size = 0x4, scoped, tag = 'scoped memory for tpu_custom_call.1']
    #allocation7 [shape = 'u8[4096]{0}', space=vmem, size = 0x1000, scoped, tag = 'input window, operand 2, single buffered']
    #allocation8 [shape = 'u8[32768]{0}', space=vmem, size = 0x8000, scoped, tag = 'output window, operand 0, single buffered']
    %8 = vsyncpa [#allocation3], 0
    %9 = vsyncpa [#allocation6], 0
    %10 = vsyncpa [#allocation4], 0
    // Predicated region
    $region2: #{tpu_custom_call.1} parent=1 // pred_check
      _
    $region3: #{tpu_custom_call.1} parent=1 // pred_check_branch
      %12 = sbr.rel (0) target = $region5
    $region4: #{tpu_custom_call.1} parent=1 // pred_region
      %s14 = ssub.s32 64, 64
      %15 = vsyncadd [#allocation3], %s14
      %s17 = sshll.u32 [#allocation2], 4
      %s18 = int_to_ptr.vmem [resolvable:$true] %s17
      %20 = dma.hbm_to_vmem [thread:$0]  %s0, 64, %s18, [#allocation3]
    $region5: #{tpu_custom_call.1} parent=1 // pred_fallthru
      _
    // Predicated region
    $region6: #{tpu_custom_call.1} parent=1 // pred_check
      _
    $region7: #{tpu_custom_call.1} parent=1 // pred_check_branch
      %22 = sbr.rel (0) target = $region9
    $region8: #{tpu_custom_call.1} parent=1 // pred_region
      %s24 = ssub.s32 2048, 2048
      %25 = vsyncadd [#allocation6], %s24
      %s26 = sshll.u32 [#allocation5], 4
      %s27 = int_to_ptr.vmem [resolvable:$true] %s26
      %32 = dma.hbm_to_vmem [thread:$0]  %s1, 2048, %s27, [#allocation6], 512, 512, 32
    $region9: #{tpu_custom_call.1} parent=1 // pred_fallthru
      _
    // Predicated region
    $region10: #{tpu_custom_call.1} parent=1 // pred_check
      _
    $region11: #{tpu_custom_call.1} parent=1 // pred_check_branch
      %34 = sbr.rel (0) target = $region13
    $region12: #{tpu_custom_call.1} parent=1 // pred_region
      %s36 = ssub.s32 128, 128
      %37 = vsyncadd [#allocation6], %s36
      %s39 = sshll.u32 [#allocation7], 4
      %s40 = int_to_ptr.vmem [resolvable:$true] %s39
      %42 = dma.hbm_to_vmem [thread:$0]  %s2, 128, %s40, [#allocation6]
    $region13: #{tpu_custom_call.1} parent=1 // pred_fallthru
      _
    // Predicated region
    $region14: #{tpu_custom_call.1} parent=1 // pred_check
      _
    $region15: #{tpu_custom_call.1} parent=1 // pred_check_branch
      %44 = sbr.rel (0) target = $region17
    $region16: #{tpu_custom_call.1} parent=1 // pred_region
      %45 = dma.done [#allocation3], 64
    $region17: #{tpu_custom_call.1} parent=1 // pred_fallthru
      _
    // Predicated region
    $region18: #{tpu_custom_call.1} parent=1 // pred_check
      _
    $region19: #{tpu_custom_call.1} parent=1 // pred_check_branch
      %47 = sbr.rel (0) target = $region21
    $region20: #{tpu_custom_call.1} parent=1 // pred_region
      %48 = dma.done [#allocation6], 2048
    $region21: #{tpu_custom_call.1} parent=1 // pred_fallthru
      _
    // Predicated region
    $region22: #{tpu_custom_call.1} parent=1 // pred_check
      _
    $region23: #{tpu_custom_call.1} parent=1 // pred_check_branch
      %50 = sbr.rel (0) target = $region25
    $region24: #{tpu_custom_call.1} parent=1 // pred_region
      %51 = dma.done [#allocation6], 128
    $region25: #{tpu_custom_call.1} parent=1 // pred_fallthru
      _
    %v53 = vld [vmem:[#allocation2] sm:$0xf]
    %v54 = vld [vmem:[#allocation5] sm:$0xff]
    %v55 = vld [vmem:[#allocation5 + $0x8] sm:$0xff]
    %v56 = vld [vmem:[#allocation5 + $0x10] sm:$0xff]
    %v57 = vld [vmem:[#allocation5 + $0x18] sm:$0xff]
    %v58 = vld [vmem:[#allocation5 + $0x20] sm:$0xff]
    %v59 = vld [vmem:[#allocation5 + $0x28] sm:$0xff]
    %v60 = vld [vmem:[#allocation5 + $0x30] sm:$0xff]
    %v61 = vld [vmem:[#allocation5 + $0x38] sm:$0xff]
    %v62 = vld [vmem:[#allocation5 + $0x40] sm:$0xff]
    %v63 = vld [vmem:[#allocation5 + $0x48] sm:$0xff]
    %v64 = vld [vmem:[#allocation5 + $0x50] sm:$0xff]
    %v65 = vld [vmem:[#allocation5 + $0x58] sm:$0xff]
    %v66 = vld [vmem:[#allocation5 + $0x60] sm:$0xff]
    %v67 = vld [vmem:[#allocation5 + $0x68] sm:$0xff]
    %v68 = vld [vmem:[#allocation5 + $0x70] sm:$0xff]
    %v69 = vld [vmem:[#allocation5 + $0x78] sm:$0xff]
    %v70 = vld [vmem:[#allocation7] sm:$0xff]
    %v72 = vlaneseq
    %v73 = vshrl.u32 %v72, 7
    %v74 = vsub.s32 0, %v73
    %v75 = vrot.slane %v70, %v74
    %v76 = vlaneseq
    %v77 = vshrl.u32 %v76, 7
    %v78 = vsub.s32 1, %v77
    %v79 = vrot.slane %v70, %v78
    %v80 = vlaneseq
    %v81 = vshrl.u32 %v80, 7
    %v82 = vsub.s32 2, %v81
    %v83 = vrot.slane %v70, %v82
    %v84 = vlaneseq
    %v85 = vshrl.u32 %v84, 7
    %v86 = vsub.s32 3, %v85
    %v87 = vrot.slane %v70, %v86
    %v88 = vlaneseq
    %v89 = vshrl.u32 %v88, 7
    %v90 = vsub.s32 4, %v89
    %v91 = vrot.slane %v70, %v90
    %v92 = vlaneseq
    %v93 = vshrl.u32 %v92, 7
    %v94 = vsub.s32 5, %v93
    %v95 = vrot.slane %v70, %v94
    %v96 = vlaneseq
    %v97 = vshrl.u32 %v96, 7
    %v98 = vsub.s32 6, %v97
    %v99 = vrot.slane %v70, %v98
    %v100 = vlaneseq
    %v101 = vshrl.u32 %v100, 7
    %v102 = vsub.s32 7, %v101
    %v103 = vrot.slane %v70, %v102
    %v128 = vunpack.c.l.b16 %v54
    %v129 = vunpack.c.h.b16 %v54
    %v130 = vunpack.c.l.b16 %v55
    %v131 = vunpack.c.h.b16 %v55
    %v132 = vunpack.c.l.b16 %v56
    %v133 = vunpack.c.h.b16 %v56
    %v134 = vunpack.c.l.b16 %v57
    %v135 = vunpack.c.h.b16 %v57
    %v136 = vunpack.c.l.b16 %v58
    %v137 = vunpack.c.h.b16 %v58
    %v138 = vunpack.c.l.b16 %v59
    %v139 = vunpack.c.h.b16 %v59
    %v140 = vunpack.c.l.b16 %v60
    %v141 = vunpack.c.h.b16 %v60
    %v142 = vunpack.c.l.b16 %v61
    %v143 = vunpack.c.h.b16 %v61
    %v144 = vunpack.c.l.b16 %v62
    %v145 = vunpack.c.h.b16 %v62
    %v146 = vunpack.c.l.b16 %v63
    %v147 = vunpack.c.h.b16 %v63
    %v148 = vunpack.c.l.b16 %v64
    %v149 = vunpack.c.h.b16 %v64
    %v150 = vunpack.c.l.b16 %v65
    %v151 = vunpack.c.h.b16 %v65
    %v152 = vunpack.c.l.b16 %v66
    %v153 = vunpack.c.h.b16 %v66
    %v154 = vunpack.c.l.b16 %v67
    %v155 = vunpack.c.h.b16 %v67
    %v156 = vunpack.c.l.b16 %v68
    %v157 = vunpack.c.h.b16 %v68
    %v158 = vunpack.c.l.b16 %v69
    %v159 = vunpack.c.h.b16 %v69
    %v160 = vpack.c.b16 %v136, %v128
    %v161 = vpack.c.b16 %v137, %v129
    %v162 = vpack.c.b16 %v138, %v130
    %v163 = vpack.c.b16 %v139, %v131
    %v164 = vpack.c.b16 %v140, %v132
    %v165 = vpack.c.b16 %v141, %v133
    %v166 = vpack.c.b16 %v142, %v134
    %v167 = vpack.c.b16 %v143, %v135
    %v168 = vpack.c.b16 %v152, %v144
    %v169 = vpack.c.b16 %v153, %v145
    %v170 = vpack.c.b16 %v154, %v146
    %v171 = vpack.c.b16 %v155, %v147
    %v172 = vpack.c.b16 %v156, %v148
    %v173 = vpack.c.b16 %v157, %v149
    %v174 = vpack.c.b16 %v158, %v150
    %v175 = vpack.c.b16 %v159, %v151
    %vm192 = vcmask 261120
    %v194 = vsel %vm192, %v53, 0
    %196 = vmatprep.subr.bf16.mxu0 0
    %197 = vmatpush1.bf16.msra.mxu0 0
    %198 = vmatprep.subr.bf16.mxu0 0
    %199 = vmatpush1.bf16.msra.mxu0 0
    %200 = vmatprep.subr.bf16.mxu0 0
    %201 = vmatpush1.bf16.msra.mxu0 0
    %202 = vmatprep.subr.bf16.mxu0 0
    %203 = vmatpush1.bf16.msra.mxu0 0
    %204 = vmatprep.subr.bf16.mxu0 0
    %205 = vmatpush1.bf16.msra.mxu0 0
    %206 = vmatprep.subr.bf16.mxu0 0
    %207 = vmatpush1.bf16.msra.mxu0 0
    %208 = vmatprep.subr.bf16.mxu0 %v169
    %209 = vmatpush1.bf16.msra.mxu0 %v168
    %210 = vmatprep.subr.bf16.mxu0 %v161
    %211 = vmatpush1.bf16.msra.mxu0 %v160
    %212 = vmatprep.subr.bf16.mxu0 0
    %213 = vmatpush2.bf16.msra.mxu0 0
    %214 = vmatprep.subr.bf16.mxu0 0
    %215 = vmatpush2.bf16.msra.mxu0 0
    %216 = vmatprep.subr.bf16.mxu0 0
    %217 = vmatpush2.bf16.msra.mxu0 0
    %218 = vmatprep.subr.bf16.mxu0 0
    %219 = vmatpush2.bf16.msra.mxu0 0
    %220 = vmatprep.subr.bf16.mxu0 0
    %221 = vmatpush2.bf16.msra.mxu0 0
    %222 = vmatprep.subr.bf16.mxu0 0
    %223 = vmatpush2.bf16.msra.mxu0 0
    %224 = vmatprep.subr.bf16.mxu0 0
    %225 = vmatpush2.bf16.msra.mxu0 0
    %226 = vmatprep.subr.bf16.mxu0 0
    %227 = vmatpush2.bf16.msra.mxu0 0
    %228 = vmatprep.mubr.bf16.mxu0 0
    %229 = vmatmul.mubr.bf16.gmra.mxu0 %v194
    %v230 = vpop.f32.mrf.mxu0
    %v231 = vadd.f32 %v75, %v230
    %v232 = vpop.f32.mrf.mxu0
    %v233 = vadd.f32 %v79, %v232
    %v234 = vpop.f32.mrf.mxu0
    %v235 = vpop.f32.mrf.mxu0
    %236 = vdwg.mxu0
    %237 = vmatprep.subr.bf16.mxu0 0
    %238 = vmatpush1.bf16.msra.mxu0 0
    %239 = vmatprep.subr.bf16.mxu0 0
    %240 = vmatpush1.bf16.msra.mxu0 0
    %241 = vmatprep.subr.bf16.mxu0 0
    %242 = vmatpush1.bf16.msra.mxu0 0
    %243 = vmatprep.subr.bf16.mxu0 0
    %244 = vmatpush1.bf16.msra.mxu0 0
    %245 = vmatprep.subr.bf16.mxu0 0
    %246 = vmatpush1.bf16.msra.mxu0 0
    %247 = vmatprep.subr.bf16.mxu0 0
    %248 = vmatpush1.bf16.msra.mxu0 0
    %249 = vmatprep.subr.bf16.mxu0 %v171
    %250 = vmatpush1.bf16.msra.mxu0 %v170
    %251 = vmatprep.subr.bf16.mxu0 %v163
    %252 = vmatpush1.bf16.msra.mxu0 %v162
    %253 = vmatprep.subr.bf16.mxu0 0
    %254 = vmatpush2.bf16.msra.mxu0 0
    %255 = vmatprep.subr.bf16.mxu0 0
    %256 = vmatpush2.bf16.msra.mxu0 0
    %257 = vmatprep.subr.bf16.mxu0 0
    %258 = vmatpush2.bf16.msra.mxu0 0
    %259 = vmatprep.subr.bf16.mxu0 0
    %260 = vmatpush2.bf16.msra.mxu0 0
    %261 = vmatprep.subr.bf16.mxu0 0
    %262 = vmatpush2.bf16.msra.mxu0 0
    %263 = vmatprep.subr.bf16.mxu0 0
    %264 = vmatpush2.bf16.msra.mxu0 0
    %265 = vmatprep.subr.bf16.mxu0 0
    %266 = vmatpush2.bf16.msra.mxu0 0
    %267 = vmatprep.subr.bf16.mxu0 0
    %268 = vmatpush2.bf16.msra.mxu0 0
    %269 = vmatprep.mubr.bf16.mxu0 0
    %270 = vmatmul.mubr.bf16.gmra.mxu0 %v194
    %v271 = vpop.f32.mrf.mxu0
    %v272 = vadd.f32 %v83, %v271
    %v273 = vpop.f32.mrf.mxu0
    %v274 = vadd.f32 %v87, %v273
    %v275 = vpop.f32.mrf.mxu0
    %v276 = vpop.f32.mrf.mxu0
    %277 = vdwg.mxu0
    %278 = vmatprep.subr.bf16.mxu0 0
    %279 = vmatpush1.bf16.msra.mxu0 0
    %280 = vmatprep.subr.bf16.mxu0 0
    %281 = vmatpush1.bf16.msra.mxu0 0
    %282 = vmatprep.subr.bf16.mxu0 0
    %283 = vmatpush1.bf16.msra.mxu0 0
    %284 = vmatprep.subr.bf16.mxu0 0
    %285 = vmatpush1.bf16.msra.mxu0 0
    %286 = vmatprep.subr.bf16.mxu0 0
    %287 = vmatpush1.bf16.msra.mxu0 0
    %288 = vmatprep.subr.bf16.mxu0 0
    %289 = vmatpush1.bf16.msra.mxu0 0
    %290 = vmatprep.subr.bf16.mxu0 %v173
    %291 = vmatpush1.bf16.msra.mxu0 %v172
    %292 = vmatprep.subr.bf16.mxu0 %v165
    %293 = vmatpush1.bf16.msra.mxu0 %v164
    %294 = vmatprep.subr.bf16.mxu0 0
    %295 = vmatpush2.bf16.msra.mxu0 0
    %296 = vmatprep.subr.bf16.mxu0 0
    %297 = vmatpush2.bf16.msra.mxu0 0
    %298 = vmatprep.subr.bf16.mxu0 0
    %299 = vmatpush2.bf16.msra.mxu0 0
    %300 = vmatprep.subr.bf16.mxu0 0
    %301 = vmatpush2.bf16.msra.mxu0 0
    %302 = vmatprep.subr.bf16.mxu0 0
    %303 = vmatpush2.bf16.msra.mxu0 0
    %304 = vmatprep.subr.bf16.mxu0 0
    %305 = vmatpush2.bf16.msra.mxu0 0
    %306 = vmatprep.subr.bf16.mxu0 0
    %307 = vmatpush2.bf16.msra.mxu0 0
    %308 = vmatprep.subr.bf16.mxu0 0
    %309 = vmatpush2.bf16.msra.mxu0 0
    %310 = vmatprep.mubr.bf16.mxu0 0
    %311 = vmatmul.mubr.bf16.gmra.mxu0 %v194
    %v312 = vpop.f32.mrf.mxu0
    %v313 = vadd.f32 %v91, %v312
    %v314 = vpop.f32.mrf.mxu0
    %v315 = vadd.f32 %v95, %v314
    %v316 = vpop.f32.mrf.mxu0
    %v317 = vpop.f32.mrf.mxu0
    %318 = vdwg.mxu0
    %319 = vmatprep.subr.bf16.mxu0 0
    %320 = vmatpush1.bf16.msra.mxu0 0
    %321 = vmatprep.subr.bf16.mxu0 0
    %322 = vmatpush1.bf16.msra.mxu0 0
    %323 = vmatprep.subr.bf16.mxu0 0
    %324 = vmatpush1.bf16.msra.mxu0 0
    %325 = vmatprep.subr.bf16.mxu0 0
    %326 = vmatpush1.bf16.msra.mxu0 0
    %327 = vmatprep.subr.bf16.mxu0 0
    %328 = vmatpush1.bf16.msra.mxu0 0
    %329 = vmatprep.subr.bf16.mxu0 0
    %330 = vmatpush1.bf16.msra.mxu0 0
    %331 = vmatprep.subr.bf16.mxu0 %v175
    %332 = vmatpush1.bf16.msra.mxu0 %v174
    %333 = vmatprep.subr.bf16.mxu0 %v167
    %334 = vmatpush1.bf16.msra.mxu0 %v166
    %335 = vmatprep.subr.bf16.mxu0 0
    %336 = vmatpush2.bf16.msra.mxu0 0
    %337 = vmatprep.subr.bf16.mxu0 0
    %338 = vmatpush2.bf16.msra.mxu0 0
    %339 = vmatprep.subr.bf16.mxu0 0
    %340 = vmatpush2.bf16.msra.mxu0 0
    %341 = vmatprep.subr.bf16.mxu0 0
    %342 = vmatpush2.bf16.msra.mxu0 0
    %343 = vmatprep.subr.bf16.mxu0 0
    %344 = vmatpush2.bf16.msra.mxu0 0
    %345 = vmatprep.subr.bf16.mxu0 0
    %346 = vmatpush2.bf16.msra.mxu0 0
    %347 = vmatprep.subr.bf16.mxu0 0
    %348 = vmatpush2.bf16.msra.mxu0 0
    %349 = vmatprep.subr.bf16.mxu0 0
    %350 = vmatpush2.bf16.msra.mxu0 0
    %351 = vmatprep.mubr.bf16.mxu0 0
    %352 = vmatmul.mubr.bf16.gmra.mxu0 %v194
    %v353 = vpop.f32.mrf.mxu0
    %v354 = vadd.f32 %v99, %v353
    %v355 = vpop.f32.mrf.mxu0
    %v356 = vadd.f32 %v103, %v355
    %v357 = vpop.f32.mrf.mxu0
    %v358 = vpop.f32.mrf.mxu0
    %359 = vdwg.mxu0
    %v360 = vtanh.pop %v231
    %v361 = vtanh.pop %v233
    %v362 = vtanh.pop %v272
    %v363 = vtanh.pop %v274
    %v364 = vtanh.pop %v313
    %v365 = vtanh.pop %v315
    %v366 = vtanh.pop %v354
    %v367 = vtanh.pop %v356
    %368 = vst [vmem:[#allocation8] sm:$0xff] %v360
    %369 = vst [vmem:[#allocation8 + $0x8] sm:$0xff] %v361
    %370 = vst [vmem:[#allocation8 + $0x10] sm:$0xff] %v362
    %371 = vst [vmem:[#allocation8 + $0x18] sm:$0xff] %v363
    %372 = vst [vmem:[#allocation8 + $0x20] sm:$0xff] %v364
    %373 = vst [vmem:[#allocation8 + $0x28] sm:$0xff] %v365
    %374 = vst [vmem:[#allocation8 + $0x30] sm:$0xff] %v366
    %375 = vst [vmem:[#allocation8 + $0x38] sm:$0xff] %v367
    // Predicated region
    $region26: #{tpu_custom_call.1} parent=1 // pred_check
      _
    $region27: #{tpu_custom_call.1} parent=1 // pred_check_branch
      %377 = sbr.rel (0) target = $region29
    $region28: #{tpu_custom_call.1} parent=1 // pred_region
      %s379 = ssub.s32 1024, 1024
      %380 = vsyncadd [#allocation4], %s379
      %s382 = sshll.u32 [#allocation8], 4
      %s383 = int_to_ptr.vmem [resolvable:$true] %s382
      %385 = dma.vmem_to_hbm [thread:$0]  %s383, 1024, %s3, [#allocation4]
    $region29: #{tpu_custom_call.1} parent=1 // pred_fallthru
      _
    // Predicated region
    $region30: #{tpu_custom_call.1} parent=1 // pred_check
      _
    $region31: #{tpu_custom_call.1} parent=1 // pred_check_branch
      %387 = sbr.rel (0) target = $region33
    $region32: #{tpu_custom_call.1} parent=1 // pred_region
      %388 = dma.done [#allocation4], 1024
    $region33: #{tpu_custom_call.1} parent=1 // pred_fallthru
      _
    %389 = vsyncpa [#allocation3], 1
    %390 = vsyncpa [#allocation6], 1
    %391 = vsyncpa [#allocation4], 1

</llo_original>
